<compile_context>
chip_gen: v5e
topology: v5e:2x2
jax: 0.10.0
libtpu: 0.0.40
codegen_flags: <defaults>
</compile_context>

<pallas_src>
import math

import jax
import jax.numpy as jnp
from jax import lax
from jax.experimental import pallas as pl
from jax.experimental.pallas import tpu as pltpu


def audio_encoder_kernel(x_lo_ref, x_halo_ref, w_ref, o_ref):
    # x_lo_ref block:   (1, hop, tk)  -- half-frames j*tk .. j*tk+tk-1 (lanes = frames)
    # x_halo_ref block: (1, hop, 128) -- half-frames starting at (j+1)*tk (halo column 0)
    # w_ref block:      (N, L)        -- Conv1d weight, resident
    # o_ref block:      (1, N, tk)    -- channels-first output tile
    lo = x_lo_ref[0]                                   # (hop, tk) f32
    halo = x_halo_ref[0, :, 0:1]                       # (hop, 1)  half-frame j*tk + tk
    hop, tk = lo.shape

    # hi[:, i] = half-frame (j*tk + i + 1): shift the lo tile left by one lane
    # (XLU roll, essentially free) and patch the last lane with the halo column.
    rolled = pltpu.roll(lo, shift=tk - 1, axis=1)      # rolled[:, i] = lo[:, (i+1) % tk]
    lane = lax.broadcasted_iota(jnp.int32, (hop, tk), 1)
    hi = jnp.where(lane == tk - 1, halo, rolled)       # (hop, tk)

    # frame k = concat(half-frame k, half-frame k+1)  ->  (L, tk), frames on lanes.
    frames_t = jnp.concatenate([lo, hi], axis=0)       # (L, tk)

    # Single MXU matmul, f32 accumulation; output already channels-first (N, tk).
    y = jnp.dot(w_ref[...], frames_t, preferred_element_type=jnp.float32)
    o_ref[0] = jnp.maximum(y, 0.0).astype(o_ref.dtype)  # ReLU


def audio_encoder(x, weight, L, *, tk=2048):
    """audioEncoder.forward.

    x:      (B, T) float32 waveform.
    weight: (N, 1, L) or (N, L) Conv1d weight (PyTorch layout).
    tk:     K-tile size (frames per grid step); rounded to a multiple of 128.
    Returns (B, N, K) like PyTorch, K = (T - L) // (L // 2) + 1.
    """
    B, T = x.shape
    W = weight.reshape(weight.shape[0], L).astype(jnp.float32)   # (N, L)
    N = W.shape[0]

    # TODO(synk): odd L (stride = (L-1)//2) would need a 3-chunk frame split;
    # only the standard even-L encoder is implemented here.
    assert L % 2 == 0, "audio_encoder: L must be even (stride = L // 2)"
    hop = L // 2
    K = (T - L) // hop + 1
    assert K >= 1, "signal shorter than one analysis window"
    n_half = K + 1

    # K-tile size: multiple of 128, no bigger than K rounded up to 128.
    tk = min(int(tk), pl.cdiv(K, 128) * 128)
    tk = max(128, (tk // 128) * 128)
    num_tiles = pl.cdiv(K, tk)
    halo_stride = tk // 128

    # Lane-dense half-frame matrix: (B, hop, width) with frame index on lanes.
    # (PyTorch's conv drops any trailing remainder of the signal, so we do too.)
    xh = x[:, : n_half * hop].reshape(B, n_half, hop)
    xh_t = jnp.transpose(xh, (0, 2, 1))                          # (B, hop, n_half)
    width = num_tiles * tk + 128                                 # room for halo block
    xh_t = jnp.pad(xh_t, ((0, 0), (0, 0), (0, width - n_half)))  # zero pad (safe)

    return pl.pallas_call(
        audio_encoder_kernel,
        out_shape=jax.ShapeDtypeStruct((B, N, K), x.dtype),
        grid=(B, num_tiles),
        in_specs=[
            # K tile of half-frames (lanes = frames).
            pl.BlockSpec((1, hop, tk), lambda b, j: (b, 0, j)),
            # Aligned 128-lane block holding the halo half-frame (j+1)*tk at lane 0.
            pl.BlockSpec((1, hop, 128), lambda b, j: (b, 0, (j + 1) * halo_stride)),
            # Conv weight, resident across all grid steps.
            pl.BlockSpec((N, L), lambda b, j: (0, 0)),
        ],
        out_specs=pl.BlockSpec((1, N, tk), lambda b, j: (b, 0, j)),
        compiler_params=pltpu.CompilerParams(
            dimension_semantics=("parallel", "parallel")),
    )(xh_t, xh_t, W)


# ------------------------- pure-JAX reference check --------------------------
def audio_encoder_ref(x, weight, L):
    B, T = x.shape
    W = weight.reshape(weight.shape[0], L)       # (N, L)
    hop = L // 2
    K = (T - L) // hop + 1
    idx = jnp.arange(K)[:, None] * hop + jnp.arange(L)[None, :]
    frames = x[:, idx]                           # (B, K, L)
    y = jnp.einsum("bkl,nl->bnk", frames, W)     # Conv1d(1, N, L, stride=hop)
    return jax.nn.relu(y)


if __name__ == "__main__":
    # Small shapes consistent with the module: L=16 (hop 8), N=128 channels,
    # K=255 frames (T=2048 samples), batch 2.  tk=128 exercises multi-tile,
    # the halo crossing a tile boundary, and a partial (masked) last K tile.
    B, L, N = 2, 16, 128
    hop = L // 2
    K = 255
    T = (K - 1) * hop + L                        # 2048

    key = jax.random.PRNGKey(0)
    kx, kw = jax.random.split(key)
    x = jax.random.normal(kx, (B, T), jnp.float32)
    # PyTorch Conv1d default init: U(-1/sqrt(fan_in), 1/sqrt(fan_in)), fan_in = L.
    w = jax.random.uniform(kw, (N, 1, L), jnp.float32, -1.0, 1.0) / math.sqrt(L)

    out = jax.block_until_ready(audio_encoder(x, w, L, tk=128))
    ref = jax.block_until_ready(audio_encoder_ref(x, w, L))

    assert out.shape == (B, N, K), out.shape
    err = float(jnp.max(jnp.abs(out - ref)))
    # f32 operands / f32 accumulation; tolerance is loose only in case the MXU
    # lowering uses reduced-precision passes for f32.
    assert err < 2e-2, f"max abs err {err}"
    print("KERNEL_OK")
</pallas_src>

<mosaic_0001>
module attributes {stable_mosaic.version = 11 : i64} {
  func.func @audio_encoder_kernel(%arg0: i32, %arg1: i32, %arg2: memref<1x8x128xf32, #tpu.memory_space<vmem>>, %arg3: memref<1x8x128xf32, #tpu.memory_space<vmem>>, %arg4: memref<128x16xf32, #tpu.memory_space<vmem>>, %arg5: memref<1x128x128xf32, #tpu.memory_space<vmem>>) attributes {dimension_semantics = [#tpu.dimension_semantics<parallel>, #tpu.dimension_semantics<parallel>], iteration_bounds = array<i64: 2, 2>, scalar_prefetch = 0 : i64, scratch_operands = 0 : i64, tpu.core_type = #tpu.core_type<tc>, window_params = [{transform_indices = @transform_0, window_bounds = array<i64: 1, 8, 128>}, {transform_indices = @transform_1, window_bounds = array<i64: 1, 8, 128>}, {pipeline_mode = #tpu.pipeline_mode<synchronous>, transform_indices = @transform_2, window_bounds = array<i64: 128, 16>}, {transform_indices = @transform_3, window_bounds = array<i64: 1, 128, 128>}]} {
    %c0 = arith.constant 0 : index
    %c0_0 = arith.constant 0 : index
    %c0_1 = arith.constant 0 : index
    %0 = vector.load %arg2[%c0, %c0_0, %c0_1] : memref<1x8x128xf32, #tpu.memory_space<vmem>>, vector<1x8x128xf32>
    %1 = vector.shape_cast %0 : vector<1x8x128xf32> to vector<8x128xf32>
    %c0_2 = arith.constant 0 : index
    %c0_3 = arith.constant 0 : index
    %c0_4 = arith.constant 0 : index
    %2 = vector.load %arg3[%c0_2, %c0_3, %c0_4] : memref<1x8x128xf32, #tpu.memory_space<vmem>>, vector<1x8x1xf32>
    %3 = vector.shape_cast %2 : vector<1x8x1xf32> to vector<8x1xf32>
    %c127_i32 = arith.constant 127 : i32
    %4 = tpu.dynamic_rotate %1 by %c127_i32 dim 1 : vector<8x128xf32>, i32 -> vector<8x128xf32>
    %5 = tpu.iota {dimensions = array<i32: 1>} : vector<8x128xi32>
    %c127_i32_5 = arith.constant 127 : i32
    %6 = vector.broadcast %c127_i32_5 : i32 to vector<8x128xi32>
    %7 = arith.cmpi eq, %5, %6 : vector<8x128xi32>
    %8 = vector.shape_cast %3 : vector<8x1xf32> to vector<8x1xf32>
    %9 = vector.broadcast %8 : vector<8x1xf32> to vector<8x128xf32>
    %10 = arith.select %7, %9, %4 : vector<8x128xi1>, vector<8x128xf32>
    %11 = tpu.concatenate %1, %10 in 0 : vector<8x128xf32>, vector<8x128xf32> -> vector<16x128xf32>
    %c0_6 = arith.constant 0 : index
    %c0_7 = arith.constant 0 : index
    %12 = vector.load %arg4[%c0_6, %c0_7] : memref<128x16xf32, #tpu.memory_space<vmem>>, vector<128x16xf32>
    %cst = arith.constant dense<0.000000e+00> : vector<128x128xf32>
    %13 = tpu.matmul %12, %11, %cst {dimension_numbers = #tpu.dot_dimension_numbers<[1], [0], [0], [1], [0, 0, 1, 1], [], []>} : vector<128x16xf32>, vector<16x128xf32>, vector<128x128xf32> -> vector<128x128xf32>
    %cst_8 = arith.constant 0.000000e+00 : f32
    %14 = vector.broadcast %cst_8 : f32 to vector<128x128xf32>
    %15 = arith.maximumf %13, %14 : vector<128x128xf32>
    %c0_9 = arith.constant 0 : index
    %c0_10 = arith.constant 0 : index
    %c0_11 = arith.constant 0 : index
    %16 = vector.load %arg5[%c0_9, %c0_10, %c0_11] : memref<1x128x128xf32, #tpu.memory_space<vmem>>, vector<1x128x128xf32>
    %17 = vector.shape_cast %16 : vector<1x128x128xf32> to vector<128x128xf32>
    %18 = vector.shape_cast %15 : vector<128x128xf32> to vector<1x128x128xf32>
    tpu.vector_store %arg5[%c0_9, %c0_10, %c0_11], %18 {strides = array<i32>} : memref<1x128x128xf32, #tpu.memory_space<vmem>>, vector<1x128x128xf32>,
    return
  }
  func.func @transform_0(%arg0: i32, %arg1: i32) -> (i32, i32, i32) {
    %c0_i32 = arith.constant 0 : i32
    %c0_i32_0 = arith.constant 0 : i32
    return %arg0, %c0_i32, %arg1 : i32, i32, i32
  }
  func.func @transform_1(%arg0: i32, %arg1: i32) -> (i32, i32, i32) {
    %c1_i32 = arith.constant 1 : i32
    %0 = arith.addi %arg1, %c1_i32 : i32
    %c1_i32_0 = arith.constant 1 : i32
    %1 = arith.muli %0, %c1_i32_0 : i32
    %c0_i32 = arith.constant 0 : i32
    %c0_i32_1 = arith.constant 0 : i32
    return %arg0, %c0_i32, %1 : i32, i32, i32
  }
  func.func @transform_2(%arg0: i32, %arg1: i32) -> (i32, i32) {
    %c0_i32 = arith.constant 0 : i32
    %c0_i32_0 = arith.constant 0 : i32
    %c0_i32_1 = arith.constant 0 : i32
    return %c0_i32, %c0_i32_0 : i32, i32
  }
  func.func @transform_3(%arg0: i32, %arg1: i32) -> (i32, i32, i32) {
    %c0_i32 = arith.constant 0 : i32
    %c0_i32_0 = arith.constant 0 : i32
    return %arg0, %c0_i32, %arg1 : i32, i32, i32
  }
}

</mosaic_0001>

<llo_original>
// kernel: tpu_custom_call.1
$region0: #{tpu_custom_call.1}
  #allocation0 [shape = 'u32[]', space=smem, size = 0x4, offset = 0x4, fixed_abs, tag = 'smem constant byte address 0x4 - core index']
  #allocation1 [shape = 'u32[72,128]{1,0:T(1,128)}', space=vmem, size = 0x9000, scoped, tag = 'internal scratch']
  %s0 = inlined_call_operand.vmem [shape: f32[2,8,384], index: 0, kind: input, shape index: {}]
  %s1 = inlined_call_operand.vmem [shape: f32[2,8,384], index: 1, kind: input, shape index: {}]
  %s2 = inlined_call_operand.vmem [shape: f32[128,16], index: 2, kind: input, shape index: {}]
  %s3 = inlined_call_operand.vmem [shape: f32[2,128,255], index: 3, kind: output, shape index: {}]
  %s4 = sld [smem:[#allocation0]]
  $region79: #{tpu_custom_call.1} parent=0
    _
  %s6 = ssub.s32 1, %s4
  %s7 = scalar_select 0, %s6, %s4
  $region1: #{tpu_custom_call.1} parent=0
    #allocation2 [shape = 'u8[131072]{0}', space=vmem, size = 0x20000, scoped, tag = 'output window, operand 0']
    loop: start=0, step=1, limit=6
    $region2: #{tpu_custom_call.1} parent=1 // loop_pre_header
      _
    $region3: #{tpu_custom_call.1} parent=1 // loop_header
      %s9 = sphi 0, %s13
      %p10 = scmp.ge.s32.totalorder %s9, 6
      %s16 = sphi 0, %s28
      %s17 = sphi 0, %s24
      %s18 = sphi 0, %s16
      %s19 = sphi 0, %s17
      %s20 = sphi 0, %s18
      %s21 = sphi 0, %s19
      %s33 = sphi 0, %s35
      %s36 = sphi 0, %s33
      %s37 = sphi 0, %s36
      %s53 = sphi 0, %s37
      %s63 = sphi 0, %s65
      %s66 = sphi 0, %s63
      %s67 = sphi 0, %s66
      %s83 = sphi 0, %s67
      %s87 = sphi 0, %s87
      %s89 = sphi 0, %s87
      %s90 = sphi 0, %s89
      %s104 = sphi 0, %s90
      %s112 = sphi 0, %s114
      %s115 = sphi 0, %s112
      %s116 = sphi 0, %s115
      %s132 = sphi 0, %s116
    $region4: #{tpu_custom_call.1} parent=1 // loop_header_branch
      %12 = sbr.rel (%p10) target = $region8
    $region5: #{tpu_custom_call.1} parent=1 // loop_body
      %s14 = ssub.s32 %s9, 1
      %s15 = ssub.s32 %s9, 2
      %s22 = sadd.s32 1, %s17
      %p23 = scmp.ge.s32.totalorder %s22, 2
      %s24 = scalar_select %p23, 0, %s22
      %s25 = sadd.s32 1, %s16
      %s26 = scalar_select %p23, %s25, %s16
      %p27 = scmp.ge.s32.totalorder %s26, 2
      %s28 = scalar_select %p27, 0, %s26
      %s29 = ssub.s32 %s16, %s28
      %s30 = ssub.s32 %s17, %s24
      %s31 = sor.u32 %s29, %s30
      %p32 = scmp.eq.s32.totalorder %s31, 0
      %s34 = sadd.s32 %s33, 1
      %s35 = scalar_select %p32, %s33, %s34
      %p38 = pneg %p32
      %p39 = scmp.eq.s32.totalorder %s9, 3
      %p40 = por %p38, %p39
      %p41 = scmp.ne.s32.totalorder %s33, %s36
      %p42 = scmp.eq.s32.totalorder %s9, 0
      %p43 = por %p41, %p42
      %p44 = scmp.ne.s32.totalorder %s33, %s36
      %p45 = scmp.eq.s32.totalorder %s14, 3
      %p46 = por %p44, %p45
      %p47 = scmp.ne.s32.totalorder %s36, %s37
      %p48 = scmp.eq.s32.totalorder %s14, 0
      %p49 = por %p47, %p48
      %p50 = scmp.ne.s32.totalorder %s36, %s37
      %p51 = scmp.eq.s32.totalorder %s15, 3
      %p52 = por %p50, %p51
      %p54 = scmp.ne.s32.totalorder %s37, %s53
      %p55 = scmp.eq.s32.totalorder %s15, 0
      %p56 = por %p54, %p55
      %s57 = sadd.s32 %s17, 1
      %s58 = sadd.s32 %s24, 1
      %s59 = ssub.s32 %s16, %s28
      %s60 = ssub.s32 %s57, %s58
      %s61 = sor.u32 %s59, %s60
      %p62 = scmp.eq.s32.totalorder %s61, 0
      %s64 = sadd.s32 %s63, 1
      %s65 = scalar_select %p62, %s63, %s64
      %p68 = pneg %p62
      %p69 = scmp.eq.s32.totalorder %s9, 3
      %p70 = por %p68, %p69
      %p71 = scmp.ne.s32.totalorder %s63, %s66
      %p72 = scmp.eq.s32.totalorder %s9, 0
      %p73 = por %p71, %p72
      %p74 = scmp.ne.s32.totalorder %s63, %s66
      %p75 = scmp.eq.s32.totalorder %s14, 3
      %p76 = por %p74, %p75
      %p77 = scmp.ne.s32.totalorder %s66, %s67
      %p78 = scmp.eq.s32.totalorder %s14, 0
      %p79 = por %p77, %p78
      %p80 = scmp.ne.s32.totalorder %s66, %s67
      %p81 = scmp.eq.s32.totalorder %s15, 3
      %p82 = por %p80, %p81
      %p84 = scmp.ne.s32.totalorder %s67, %s83
      %p85 = scmp.eq.s32.totalorder %s15, 0
      %p86 = por %p84, %p85
      %s88 = sadd.s32 %s87, 1
      %p91 = scmp.eq.s32.totalorder %s9, 3
      %p92 = scmp.ne.s32.totalorder %s87, %s89
      %p93 = scmp.eq.s32.totalorder %s9, 0
      %p94 = por %p92, %p93
      %p95 = scmp.ne.s32.totalorder %s87, %s89
      %p96 = scmp.eq.s32.totalorder %s14, 3
      %p97 = por %p95, %p96
      %p98 = scmp.ne.s32.totalorder %s89, %s90
      %p99 = scmp.eq.s32.totalorder %s14, 0
      %p100 = por %p98, %p99
      %p101 = scmp.ne.s32.totalorder %s89, %s90
      %p102 = scmp.eq.s32.totalorder %s15, 3
      %p103 = por %p101, %p102
      %p105 = scmp.ne.s32.totalorder %s90, %s104
      %p106 = scmp.eq.s32.totalorder %s15, 0
      %p107 = por %p105, %p106
      %s108 = ssub.s32 %s16, %s28
      %s109 = ssub.s32 %s17, %s24
      %s110 = sor.u32 %s108, %s109
      %p111 = scmp.eq.s32.totalorder %s110, 0
      %s113 = sadd.s32 %s112, 1
      %s114 = scalar_select %p111, %s112, %s113
      %p117 = pneg %p111
      %p118 = scmp.eq.s32.totalorder %s9, 3
      %p119 = por %p117, %p118
      %p120 = scmp.ne.s32.totalorder %s112, %s115
      %p121 = scmp.eq.s32.totalorder %s9, 0
      %p122 = por %p120, %p121
      %p123 = scmp.ne.s32.totalorder %s112, %s115
      %p124 = scmp.eq.s32.totalorder %s14, 3
      %p125 = por %p123, %p124
      %p126 = scmp.ne.s32.totalorder %s115, %s116
      %p127 = scmp.eq.s32.totalorder %s14, 0
      %p128 = por %p126, %p127
      %p129 = scmp.ne.s32.totalorder %s115, %s116
      %p130 = scmp.eq.s32.totalorder %s15, 3
      %p131 = por %p129, %p130
      %p133 = scmp.ne.s32.totalorder %s116, %s132
      %p134 = scmp.eq.s32.totalorder %s15, 0
      %p135 = por %p133, %p134
      %p136 = scmp.le.s32.totalorder 1, %s9
      %p137 = scmp.lt.s32.totalorder %s9, 5
      %p138 = pnand %p136, %p137
      %p139 = pneg %p138
      // Predicated region
      $region9: #{tpu_custom_call.1} parent=5 // pred_check
        _
      $region10: #{tpu_custom_call.1} parent=5 // pred_check_branch
        %141 = sbr.rel (%p138) target = $region12
      $region11: #{tpu_custom_call.1} parent=5 // pred_region
        %s142 = ssub.s32 %s9, 1
        // Predicated region
        $region13: #{tpu_custom_call.1} parent=11 // pred_check
          %p143 = pneg %p100
        $region14: #{tpu_custom_call.1} parent=11 // pred_check_branch
          %145 = sbr.rel (%p143) target = $region16
        $region15: #{tpu_custom_call.1} parent=11 // pred_region
          _
        $region16: #{tpu_custom_call.1} parent=11 // pred_fallthru
          _
      $region12: #{tpu_custom_call.1} parent=5 // pred_fallthru
        _
      %p146 = scmp.lt.s32.totalorder %s9, 4
      // Predicated region
      $region17: #{tpu_custom_call.1} parent=5 // pred_check
        %p147 = pneg %p146
      $region18: #{tpu_custom_call.1} parent=5 // pred_check_branch
        %149 = sbr.rel (%p147) target = $region20
      $region19: #{tpu_custom_call.1} parent=5 // pred_region
        // Predicated region
        $region21: #{tpu_custom_call.1} parent=19 // pred_check
          %p150 = pneg %p43
        $region22: #{tpu_custom_call.1} parent=19 // pred_check_branch
          %152 = sbr.rel (%p150) target = $region24
        $region23: #{tpu_custom_call.1} parent=19 // pred_region
          %p153 = scmp.lt.s32.totalorder %s16, 1
          %s154 = scalar_select %p153, %s16, 1
          %p155 = scmp.lt.s32.totalorder %s17, 2
          %s156 = scalar_select %p155, %s17, 2
          %s157 = smul.addr %s154, 3
          %s158 = sadd.s32 %s156, %s157
          %s159 = smul.addr %s158, 8
          %s160 = scalar_lea.vmem %s0, %s159
        $region24: #{tpu_custom_call.1} parent=19 // pred_fallthru
          _
        // Predicated region
        $region25: #{tpu_custom_call.1} parent=19 // pred_check
          %p161 = pneg %p73
        $region26: #{tpu_custom_call.1} parent=19 // pred_check_branch
          %163 = sbr.rel (%p161) target = $region28
        $region27: #{tpu_custom_call.1} parent=19 // pred_region
          %s164 = sadd.s32 %s17, 1
          %p165 = scmp.lt.s32.totalorder %s16, 1
          %s166 = scalar_select %p165, %s16, 1
          %p167 = scmp.lt.s32.totalorder %s164, 2
          %s168 = scalar_select %p167, %s164, 2
          %s169 = smul.addr %s166, 3
          %s170 = sadd.s32 %s168, %s169
          %s171 = smul.addr %s170, 8
          %s172 = scalar_lea.vmem %s1, %s171
          %s173 = sadd.s32 %s17, 1
        $region28: #{tpu_custom_call.1} parent=19 // pred_fallthru
          _
      $region20: #{tpu_custom_call.1} parent=5 // pred_fallthru
        _
      %p174 = scmp.le.s32.totalorder 1, %s9
      %p175 = scmp.lt.s32.totalorder %s9, 5
      %p176 = pnand %p174, %p175
      %p177 = pneg %p176
      // Predicated region
      $region29: #{tpu_custom_call.1} parent=5 // pred_check
        _
      $region30: #{tpu_custom_call.1} parent=5 // pred_check_branch
        %179 = sbr.rel (%p176) target = $region32
      $region31: #{tpu_custom_call.1} parent=5 // pred_region
        %s180 = ssub.s32 %s9, 1
        %p181 = scmp.lt.s32.totalorder %s18, 1
        %s182 = scalar_select %p181, %s18, 1
        %p183 = scmp.lt.s32.totalorder %s19, 2
        %s184 = scalar_select %p183, %s19, 2
        %s185 = smul.addr %s182, 3
        %s186 = sadd.s32 %s184, %s185
        %s187 = smul.addr %s186, 8
        %s188 = scalar_lea.vmem %s0, %s187
        %p189 = pneg %p49
        %p190 = pneg %p46
        %s191 = sadd.s32 %s19, 1
        %p192 = scmp.lt.s32.totalorder %s18, 1
        %s193 = scalar_select %p192, %s18, 1
        %p194 = scmp.lt.s32.totalorder %s191, 2
        %s195 = scalar_select %p194, %s191, 2
        %s196 = smul.addr %s193, 3
        %s197 = sadd.s32 %s195, %s196
        %s198 = smul.addr %s197, 8
        %s199 = scalar_lea.vmem %s1, %s198
        %p200 = pneg %p79
        %p201 = pneg %p76
        %p202 = pneg %p100
        %p203 = pneg %p97
        %p204 = pneg %p128
        %p205 = pneg %p125
        %s206 = sand.u32 %s115, 1
        %s207 = sand.u32 %s115, 1
        %s208 = smul.addr %s207, 128
        %s209 = scalar_lea.vmem [#allocation2], %s208
        %p210 = scmp.lt.s32.totalorder %s18, 1
        %s211 = scalar_select %p210, %s18, 1
        %p212 = scmp.lt.s32.totalorder %s19, 2
        %s213 = scalar_select %p212, %s19, 2
        %s214 = smul.addr %s211, 3
        %s215 = sadd.s32 %s213, %s214
        %s216 = smul.addr %s215, 8
        %s217 = scalar_lea.vmem %s0, %s216
        %s218 = sadd.s32 %s19, 1
        %p219 = scmp.lt.s32.totalorder %s18, 1
        %s220 = scalar_select %p219, %s18, 1
        %p221 = scmp.lt.s32.totalorder %s218, 2
        %s222 = scalar_select %p221, %s218, 2
        %s223 = smul.addr %s220, 3
        %s224 = sadd.s32 %s222, %s223
        %s225 = smul.addr %s224, 8
        %s226 = scalar_lea.vmem %s1, %s225
        %s227 = sadd.s32 %s19, 1
        %v228 = vld [vmem:[%s217] sm:$0xff]
        %v229 = vld [vmem:[%s226] sm:$0xff]
        %230 = vrot.lane.b32.xlu0 %v228, 127
        %v231 = vpop.permute.xlu0 %230
        %v232 = vlaneseq
        %v233 = vand.u32 %v232, 127
        %vm234 = vcmp.eq.s32.totalorder %v233, 127
        %236 = vset.pattern.permute.xlu0 0
        %237 = vperm.xlu0 %236, %v229
        %v238 = vpop.permute.xlu0 %237
        %v240 = vsel %vm234, %v238, %v231
        %v241 = vld [vmem:[%s2] sm:$0xff]
        %v242 = vld [vmem:[%s2 + $0x8] sm:$0xff]
        %v243 = vld [vmem:[%s2 + $0x10] sm:$0xff]
        %v244 = vld [vmem:[%s2 + $0x18] sm:$0xff]
        %v245 = vld [vmem:[%s2 + $0x20] sm:$0xff]
        %v246 = vld [vmem:[%s2 + $0x28] sm:$0xff]
        %v247 = vld [vmem:[%s2 + $0x30] sm:$0xff]
        %v248 = vld [vmem:[%s2 + $0x38] sm:$0xff]
        %v249 = vld [vmem:[%s2 + $0x40] sm:$0xff]
        %v250 = vld [vmem:[%s2 + $0x48] sm:$0xff]
        %v251 = vld [vmem:[%s2 + $0x50] sm:$0xff]
        %v252 = vld [vmem:[%s2 + $0x58] sm:$0xff]
        %v253 = vld [vmem:[%s2 + $0x60] sm:$0xff]
        %v254 = vld [vmem:[%s2 + $0x68] sm:$0xff]
        %v255 = vld [vmem:[%s2 + $0x70] sm:$0xff]
        %v256 = vld [vmem:[%s2 + $0x78] sm:$0xff]
        %vm257 = vcmask 130048
        %v259 = vsel %vm257, %v241, 0
        %v262 = vsel %vm257, %v242, 0
        %v265 = vsel %vm257, %v243, 0
        %v268 = vsel %vm257, %v244, 0
        %v271 = vsel %vm257, %v245, 0
        %v274 = vsel %vm257, %v246, 0
        %v277 = vsel %vm257, %v247, 0
        %v280 = vsel %vm257, %v248, 0
        %v283 = vsel %vm257, %v249, 0
        %v286 = vsel %vm257, %v250, 0
        %v289 = vsel %vm257, %v251, 0
        %v292 = vsel %vm257, %v252, 0
        %v295 = vsel %vm257, %v253, 0
        %v298 = vsel %vm257, %v254, 0
        %v301 = vsel %vm257, %v255, 0
        %v304 = vsel %vm257, %v256, 0
        %306 = vmatpush.msra.mxu0 0.0
        %307 = vmatpush.msra.mxu0 0.0
        %308 = vmatpush.msra.mxu0 0.0
        %309 = vmatpush.msra.mxu0 0.0
        %310 = vmatpush.msra.mxu0 0.0
        %311 = vmatpush.msra.mxu0 0.0
        %312 = vmatpush.msra.mxu0 0.0
        %313 = vmatpush.msra.mxu0 0.0
        %314 = vmatpush.msra.mxu0 0.0
        %315 = vmatpush.msra.mxu0 0.0
        %316 = vmatpush.msra.mxu0 0.0
        %317 = vmatpush.msra.mxu0 0.0
        %318 = vmatpush.msra.mxu0 0.0
        %319 = vmatpush.msra.mxu0 0.0
        %320 = vmatpush.msra.mxu0 %v240
        %321 = vmatpush.msra.mxu0 %v228
        %322 = vmatmul.f32.gmra.mxu0 %v259
        %v323 = vpop.f32.mrf.mxu0
        %v324 = vadd.f32 0.0, %v323
        %325 = vmatmul.f32.gmra.mxu0 %v262
        %v326 = vpop.f32.mrf.mxu0
        %v327 = vadd.f32 0.0, %v326
        %328 = vmatmul.f32.gmra.mxu0 %v265
        %v329 = vpop.f32.mrf.mxu0
        %v330 = vadd.f32 0.0, %v329
        %331 = vmatmul.f32.gmra.mxu0 %v268
        %v332 = vpop.f32.mrf.mxu0
        %v333 = vadd.f32 0.0, %v332
        %334 = vmatmul.f32.gmra.mxu0 %v271
        %v335 = vpop.f32.mrf.mxu0
        %v336 = vadd.f32 0.0, %v335
        %337 = vmatmul.f32.gmra.mxu0 %v274
        %v338 = vpop.f32.mrf.mxu0
        %v339 = vadd.f32 0.0, %v338
        %340 = vmatmul.f32.gmra.mxu0 %v277
        %v341 = vpop.f32.mrf.mxu0
        %v342 = vadd.f32 0.0, %v341
        %343 = vmatmul.f32.gmra.mxu0 %v280
        %v344 = vpop.f32.mrf.mxu0
        %v345 = vadd.f32 0.0, %v344
        %346 = vmatmul.f32.gmra.mxu0 %v283
        %v347 = vpop.f32.mrf.mxu0
        %v348 = vadd.f32 0.0, %v347
        %349 = vmatmul.f32.gmra.mxu0 %v286
        %v350 = vpop.f32.mrf.mxu0
        %v351 = vadd.f32 0.0, %v350
        %352 = vmatmul.f32.gmra.mxu0 %v289
        %v353 = vpop.f32.mrf.mxu0
        %v354 = vadd.f32 0.0, %v353
        %355 = vmatmul.f32.gmra.mxu0 %v292
        %v356 = vpop.f32.mrf.mxu0
        %v357 = vadd.f32 0.0, %v356
        %358 = vmatmul.f32.gmra.mxu0 %v295
        %v359 = vpop.f32.mrf.mxu0
        %v360 = vadd.f32 0.0, %v359
        %361 = vmatmul.f32.gmra.mxu0 %v298
        %v362 = vpop.f32.mrf.mxu0
        %v363 = vadd.f32 0.0, %v362
        %364 = vmatmul.f32.gmra.mxu0 %v301
        %v365 = vpop.f32.mrf.mxu0
        %v366 = vadd.f32 0.0, %v365
        %367 = vmatmul.f32.gmra.mxu0 %v304
        %v368 = vpop.f32.mrf.mxu0
        %v369 = vadd.f32 0.0, %v368
        %370 = vdwg.mxu0
        %v371 = vmax.f32 %v324, 0.0
        %v372 = vmax.f32 %v327, 0.0
        %v373 = vmax.f32 %v330, 0.0
        %v374 = vmax.f32 %v333, 0.0
        %v375 = vmax.f32 %v336, 0.0
        %v376 = vmax.f32 %v339, 0.0
        %v377 = vmax.f32 %v342, 0.0
        %v378 = vmax.f32 %v345, 0.0
        %v379 = vmax.f32 %v348, 0.0
        %v380 = vmax.f32 %v351, 0.0
        %v381 = vmax.f32 %v354, 0.0
        %v382 = vmax.f32 %v357, 0.0
        %v383 = vmax.f32 %v360, 0.0
        %v384 = vmax.f32 %v363, 0.0
        %v385 = vmax.f32 %v366, 0.0
        %v386 = vmax.f32 %v369, 0.0
        %387 = vst [vmem:[%s209] sm:$0xff] %v371
        %388 = vst [vmem:[%s209 + $0x8] sm:$0xff] %v372
        %389 = vst [vmem:[%s209 + $0x10] sm:$0xff] %v373
        %390 = vst [vmem:[%s209 + $0x18] sm:$0xff] %v374
        %391 = vst [vmem:[%s209 + $0x20] sm:$0xff] %v375
        %392 = vst [vmem:[%s209 + $0x28] sm:$0xff] %v376
        %393 = vst [vmem:[%s209 + $0x30] sm:$0xff] %v377
        %394 = vst [vmem:[%s209 + $0x38] sm:$0xff] %v378
        %395 = vst [vmem:[%s209 + $0x40] sm:$0xff] %v379
        %396 = vst [vmem:[%s209 + $0x48] sm:$0xff] %v380
        %397 = vst [vmem:[%s209 + $0x50] sm:$0xff] %v381
        %398 = vst [vmem:[%s209 + $0x58] sm:$0xff] %v382
        %399 = vst [vmem:[%s209 + $0x60] sm:$0xff] %v383
        %400 = vst [vmem:[%s209 + $0x68] sm:$0xff] %v384
        %401 = vst [vmem:[%s209 + $0x70] sm:$0xff] %v385
        %402 = vst [vmem:[%s209 + $0x78] sm:$0xff] %v386
        %s403 = sand.u32 %s115, 1
        %s404 = sand.u32 %s115, 1
        %s405 = smul.addr %s404, 128
        %s406 = scalar_lea.vmem [#allocation2], %s405
        // Predicated region
        $region33: #{tpu_custom_call.1} parent=31 // pred_check
          %p407 = pneg %p125
        $region34: #{tpu_custom_call.1} parent=31 // pred_check_branch
          %409 = sbr.rel (%p407) target = $region36
        $region35: #{tpu_custom_call.1} parent=31 // pred_region
          %s410 = smul.addr %s18, 32
          %s411 = sadd.s32 %s19, %s410
          %s412 = smul.addr %s411, 8
          %s413 = scalar_lea.vmem %s3, %s412
          // Predicated region
          $region37: #{tpu_custom_call.1} parent=35 // pred_check
            _
          $region38: #{tpu_custom_call.1} parent=35 // pred_check_branch
            %415 = sbr.rel (0) target = $region40
          $region39: #{tpu_custom_call.1} parent=35 // pred_region
            // Predicated region
            $region41: #{tpu_custom_call.1} parent=39 // pred_check
              _
            $region42: #{tpu_custom_call.1} parent=39 // pred_check_branch
              %417 = sbr.rel (0) target = $region44
            $region43: #{tpu_custom_call.1} parent=39 // pred_region
              // Predicated region
              $region56: #{tpu_custom_call.1} parent=43 // pred_check
                _
              $region57: #{tpu_custom_call.1} parent=43 // pred_check_branch
                %463 = sbr.rel (0) target = $region59
              $region58: #{tpu_custom_call.1} parent=43 // pred_region
                loop: start=0, step=1, limit=1
                $region60: #{tpu_custom_call.1} parent=58 // loop_pre_header
                  _
                $region61: #{tpu_custom_call.1} parent=58 // loop_header
                  %s465 = sphi 0, %s469
                  %p466 = scmp.ge.s32.totalorder %s465, 1
                  %s470 = sphi %s406, %s406
                  %s471 = sphi %s413, %s413
                $region62: #{tpu_custom_call.1} parent=58 // loop_header_branch
                  %468 = sbr.rel (%p466) target = $region66
                $region63: #{tpu_custom_call.1} parent=58 // loop_body
                  %v472 = vld [vmem:[%s470] sm:$0xff]
                  %473 = vst [vmem:[%s471] sm:$0xff] %v472
                  %v474 = vld [vmem:[%s470 + $0x8] sm:$0xff]
                  %475 = vst [vmem:[%s471 + $0x10] sm:$0xff] %v474
                  %v476 = vld [vmem:[%s470 + $0x10] sm:$0xff]
                  %477 = vst [vmem:[%s471 + $0x20] sm:$0xff] %v476
                  %v478 = vld [vmem:[%s470 + $0x18] sm:$0xff]
                  %479 = vst [vmem:[%s471 + $0x30] sm:$0xff] %v478
                  %v480 = vld [vmem:[%s470 + $0x20] sm:$0xff]
                  %481 = vst [vmem:[%s471 + $0x40] sm:$0xff] %v480
                  %v482 = vld [vmem:[%s470 + $0x28] sm:$0xff]
                  %483 = vst [vmem:[%s471 + $0x50] sm:$0xff] %v482
                  %v484 = vld [vmem:[%s470 + $0x30] sm:$0xff]
                  %485 = vst [vmem:[%s471 + $0x60] sm:$0xff] %v484
                  %v486 = vld [vmem:[%s470 + $0x38] sm:$0xff]
                  %487 = vst [vmem:[%s471 + $0x70] sm:$0xff] %v486
                  %v488 = vld [vmem:[%s470 + $0x40] sm:$0xff]
                  %489 = vst [vmem:[%s471 + $0x80] sm:$0xff] %v488
                  %v490 = vld [vmem:[%s470 + $0x48] sm:$0xff]
                  %491 = vst [vmem:[%s471 + $0x90] sm:$0xff] %v490
                  %v492 = vld [vmem:[%s470 + $0x50] sm:$0xff]
                  %493 = vst [vmem:[%s471 + $0xa0] sm:$0xff] %v492
                  %v494 = vld [vmem:[%s470 + $0x58] sm:$0xff]
                  %495 = vst [vmem:[%s471 + $0xb0] sm:$0xff] %v494
                  %v496 = vld [vmem:[%s470 + $0x60] sm:$0xff]
                  %497 = vst [vmem:[%s471 + $0xc0] sm:$0xff] %v496
                  %v498 = vld [vmem:[%s470 + $0x68] sm:$0xff]
                  %499 = vst [vmem:[%s471 + $0xd0] sm:$0xff] %v498
                  %v500 = vld [vmem:[%s470 + $0x70] sm:$0xff]
                  %501 = vst [vmem:[%s471 + $0xe0] sm:$0xff] %v500
                  %v502 = vld [vmem:[%s470 + $0x78] sm:$0xff]
                  %503 = vst [vmem:[%s471 + $0xf0] sm:$0xff] %v502
                $region64: #{tpu_custom_call.1} parent=58 // loop_footer
                  %s469 = sadd.s32 1, %s465
                $region65: #{tpu_custom_call.1} parent=58 // loop_footer_branch
                  %464 = sbr.rel target = $region61
                $region66: #{tpu_custom_call.1} parent=58 // loop_exit
                  _
              $region59: #{tpu_custom_call.1} parent=43 // pred_fallthru
                _
              // Predicated region
              $region67: #{tpu_custom_call.1} parent=43 // pred_check
                _
              $region68: #{tpu_custom_call.1} parent=43 // pred_check_branch
                %505 = sbr.rel target = $region70
              $region69: #{tpu_custom_call.1} parent=43 // pred_region
                _
              $region70: #{tpu_custom_call.1} parent=43 // pred_fallthru
                _
            $region44: #{tpu_custom_call.1} parent=39 // pred_fallthru
              _
            // Predicated region
            $region45: #{tpu_custom_call.1} parent=39 // pred_check
              _
            $region46: #{tpu_custom_call.1} parent=39 // pred_check_branch
              %419 = sbr.rel target = $region48
            $region47: #{tpu_custom_call.1} parent=39 // pred_region
              %s421 = ssub.s32 256, 1
              loop: start=0, step=1, limit=1
              $region49: #{tpu_custom_call.1} parent=47 // loop_pre_header
                _
              $region50: #{tpu_custom_call.1} parent=47 // loop_header
                %s423 = sphi 0, %s427
                %p424 = scmp.ge.s32.totalorder %s423, 1
                %s428 = sphi %s406, %s406
                %s429 = sphi %s413, %s413
              $region51: #{tpu_custom_call.1} parent=47 // loop_header_branch
                %426 = sbr.rel (%p424) target = $region55
              $region52: #{tpu_custom_call.1} parent=47 // loop_body
                %v430 = vld [vmem:[%s428] sm:%s421]
                %431 = vst [vmem:[%s429] sm:%s421] %v430
                %v432 = vld [vmem:[%s428 + $0x8] sm:%s421]
                %433 = vst [vmem:[%s429 + $0x10] sm:%s421] %v432
                %v434 = vld [vmem:[%s428 + $0x10] sm:%s421]
                %435 = vst [vmem:[%s429 + $0x20] sm:%s421] %v434
                %v436 = vld [vmem:[%s428 + $0x18] sm:%s421]
                %437 = vst [vmem:[%s429 + $0x30] sm:%s421] %v436
                %v438 = vld [vmem:[%s428 + $0x20] sm:%s421]
                %439 = vst [vmem:[%s429 + $0x40] sm:%s421] %v438
                %v440 = vld [vmem:[%s428 + $0x28] sm:%s421]
                %441 = vst [vmem:[%s429 + $0x50] sm:%s421] %v440
                %v442 = vld [vmem:[%s428 + $0x30] sm:%s421]
                %443 = vst [vmem:[%s429 + $0x60] sm:%s421] %v442
                %v444 = vld [vmem:[%s428 + $0x38] sm:%s421]
                %445 = vst [vmem:[%s429 + $0x70] sm:%s421] %v444
                %v446 = vld [vmem:[%s428 + $0x40] sm:%s421]
                %447 = vst [vmem:[%s429 + $0x80] sm:%s421] %v446
                %v448 = vld [vmem:[%s428 + $0x48] sm:%s421]
                %449 = vst [vmem:[%s429 + $0x90] sm:%s421] %v448
                %v450 = vld [vmem:[%s428 + $0x50] sm:%s421]
                %451 = vst [vmem:[%s429 + $0xa0] sm:%s421] %v450
                %v452 = vld [vmem:[%s428 + $0x58] sm:%s421]
                %453 = vst [vmem:[%s429 + $0xb0] sm:%s421] %v452
                %v454 = vld [vmem:[%s428 + $0x60] sm:%s421]
                %455 = vst [vmem:[%s429 + $0xc0] sm:%s421] %v454
                %v456 = vld [vmem:[%s428 + $0x68] sm:%s421]
                %457 = vst [vmem:[%s429 + $0xd0] sm:%s421] %v456
                %v458 = vld [vmem:[%s428 + $0x70] sm:%s421]
                %459 = vst [vmem:[%s429 + $0xe0] sm:%s421] %v458
                %v460 = vld [vmem:[%s428 + $0x78] sm:%s421]
                %461 = vst [vmem:[%s429 + $0xf0] sm:%s421] %v460
              $region53: #{tpu_custom_call.1} parent=47 // loop_footer
                %s427 = sadd.s32 1, %s423
              $region54: #{tpu_custom_call.1} parent=47 // loop_footer_branch
                %422 = sbr.rel target = $region50
              $region55: #{tpu_custom_call.1} parent=47 // loop_exit
                _
            $region48: #{tpu_custom_call.1} parent=39 // pred_fallthru
              _
          $region40: #{tpu_custom_call.1} parent=35 // pred_fallthru
            _
          %506 = vnop
        $region36: #{tpu_custom_call.1} parent=31 // pred_fallthru
          _
      $region32: #{tpu_custom_call.1} parent=5 // pred_fallthru
        _
      %p507 = scmp.le.s32.totalorder 2, %s9
      // Predicated region
      $region71: #{tpu_custom_call.1} parent=5 // pred_check
        %p508 = pneg %p507
      $region72: #{tpu_custom_call.1} parent=5 // pred_check_branch
        %510 = sbr.rel (%p508) target = $region74
      $region73: #{tpu_custom_call.1} parent=5 // pred_region
        %s511 = ssub.s32 %s9, 2
        // Predicated region
        $region75: #{tpu_custom_call.1} parent=73 // pred_check
          %p512 = pneg %p131
        $region76: #{tpu_custom_call.1} parent=73 // pred_check_branch
          %514 = sbr.rel (%p512) target = $region78
        $region77: #{tpu_custom_call.1} parent=73 // pred_region
          %s515 = sand.u32 %s116, 1
          %s516 = sand.u32 %s116, 1
          %s517 = smul.addr %s516, 128
          %s518 = scalar_lea.vmem [#allocation2], %s517
        $region78: #{tpu_custom_call.1} parent=73 // pred_fallthru
          _
      $region74: #{tpu_custom_call.1} parent=5 // pred_fallthru
        _
    $region6: #{tpu_custom_call.1} parent=1 // loop_footer
      %s13 = sadd.s32 1, %s9
    $region7: #{tpu_custom_call.1} parent=1 // loop_footer_branch
      %8 = sbr.rel target = $region3
    $region8: #{tpu_custom_call.1} parent=1 // loop_exit
      _

</llo_original>
